<compile_context>
chip_gen: v7x
topology: tpu7x:2x2x1
jax: 0.10.0
libtpu: 0.0.40
codegen_flags: <defaults>
</compile_context>

<pallas_src>
import functools

import jax
import jax.numpy as jnp
from jax.experimental import pallas as pl
from jax.experimental.pallas import tpu as pltpu


def _temporal_block_kernel(xp_ref, w1_ref, w2_ref, wds_ref, bias_ref, o_ref,
                           *, K, D, P, L1, Lpad, N):
    """Whole batch in one step; batch folded into the lane axis.

    Each batch element owns a lane "segment" of width Lpad = L + 2P laid out as
    [P zeros | x_b | P zeros].

    xp_ref  : (C_in, N + P)    padded, batch-folded input (+P trailing zeros so every
                               tap window is an in-bounds static lane slice)
    w1_ref  : (C_out, K*C_in)  conv1 weight, taps folded into the contraction
    w2_ref  : (C_out, K*C_out) conv2 weight, taps folded into the contraction
    wds_ref : (C_out, C_in)    1x1 downsample weight (identity if downsample is None)
    bias_ref: (C_out, 3)       [b1 | b2 | b_ds]
    o_ref   : (C_out, N)       valid at per-segment lane positions [0, L)
    """
    c_out = o_ref.shape[0]

    # ---- conv1: ONE MXU matmul, taps folded into the contraction ----
    # stacked RHS row (t*C_in + c), lane i  ==  xp[c, i + t*D]
    xs = jnp.concatenate([xp_ref[:, t * D: t * D + N] for t in range(K)], axis=0)
    h1 = jnp.dot(w1_ref[...], xs, preferred_element_type=jnp.float32)
    h1 = jnp.maximum(h1 + bias_ref[:, 0:1], 0.0)          # relu1 (dropout1 = identity)

    # Zero the per-segment tail [L1, Lpad): those lanes hold relu(b1) junk (their
    # receptive field is all padding) and they double as conv2's zero padding.
    seg_pos = jax.lax.broadcasted_iota(jnp.int32, (c_out, N), 1) % Lpad
    h1 = jnp.where(seg_pos < L1, h1, 0.0)

    # ---- conv2: ONE MXU matmul; only the last-L outputs per segment are needed:
    #      out2_seg[2P + j] = sum_t w2[t] @ h1_seg[j + P + t*D],  j in [0, L) ----
    h1e = jnp.concatenate([h1, jnp.zeros((c_out, 2 * P), h1.dtype)], axis=1)
    hs = jnp.concatenate(
        [jax.lax.slice_in_dim(h1e, P + t * D, P + t * D + N, axis=1)
         for t in range(K)], axis=0)
    h2 = jnp.dot(w2_ref[...], hs, preferred_element_type=jnp.float32)
    h2 = jnp.maximum(h2 + bias_ref[:, 1:2], 0.0)          # relu2 (dropout2 = identity)

    # ---- residual 1x1 conv on the unpadded input (x_b[:, j] = xp[:, seg + P + j]) ----
    res = jnp.dot(wds_ref[...], xp_ref[:, P: P + N],
                  preferred_element_type=jnp.float32) + bias_ref[:, 2:3]

    # final relu(out[:, :, -L:] + res); per-segment positions [0, L) are the valid ones.
    o_ref[...] = jnp.maximum(h2 + res, 0.0).astype(o_ref.dtype)


def temporal_block(x, w1, b1, w2, b2, wds=None, bds=None, *, kernel_size, dilation):
    """x: (B, C_in, L); weights in PyTorch Conv1d layout:
       w1 (C_out, C_in, K), w2 (C_out, C_out, K), wds (C_out, C_in, 1) or None."""
    B, C_in, L = x.shape
    C_out = w1.shape[0]
    K, D = kernel_size, dilation
    P = (K - 1) * D
    L1 = L + P                 # conv1 output length (stride 1, padding P)
    Lpad = L + 2 * P           # per-batch lane segment width
    N = B * Lpad               # folded (lane-dense) width

    f32 = jnp.float32
    # glue: layout only (transpose / pad / reshape); all compute happens in the kernel.
    xp = jnp.transpose(x.astype(f32), (1, 0, 2))                   # (C_in, B, L)
    xp = jnp.pad(xp, ((0, 0), (0, 0), (P, P))).reshape(C_in, N)    # per-batch segments
    xp = jnp.pad(xp, ((0, 0), (0, P)))                             # +P trailing zeros

    # taps folded into the contraction dim, row index = t*C + c
    w1f = jnp.transpose(w1.astype(f32), (0, 2, 1)).reshape(C_out, K * C_in)
    w2f = jnp.transpose(w2.astype(f32), (0, 2, 1)).reshape(C_out, K * C_out)

    if wds is None:            # PyTorch: downsample=None when C_in == C_out -> res = x
        assert C_in == C_out, "downsample=None requires C_in == C_out"
        wds_m = jnp.eye(C_out, dtype=f32)
        bds_v = jnp.zeros((C_out,), f32)
    else:
        wds_m = wds.reshape(C_out, C_in).astype(f32)
        bds_v = bds.astype(f32)
    bias = jnp.stack([b1.astype(f32), b2.astype(f32), bds_v], axis=1)   # (C_out, 3)

    kernel = functools.partial(_temporal_block_kernel,
                               K=K, D=D, P=P, L1=L1, Lpad=Lpad, N=N)

    out = pl.pallas_call(
        kernel,
        out_shape=jax.ShapeDtypeStruct((C_out, N), f32),
        grid_spec=pltpu.PrefetchScalarGridSpec(
            num_scalar_prefetch=0,
            grid=(1,),          # whole batch in one step (B is folded into lanes)
            in_specs=[
                pl.BlockSpec((C_in, N + P), lambda i: (0, 0)),
                pl.BlockSpec((C_out, K * C_in), lambda i: (0, 0)),
                pl.BlockSpec((C_out, K * C_out), lambda i: (0, 0)),
                pl.BlockSpec((C_out, C_in), lambda i: (0, 0)),
                pl.BlockSpec((C_out, 3), lambda i: (0, 0)),
            ],
            out_specs=pl.BlockSpec((C_out, N), lambda i: (0, 0)),
        ),
        compiler_params=pltpu.CompilerParams(
            dimension_semantics=("arbitrary",)),
    )(xp, w1f, w2f, wds_m, bias)

    # glue: unfold lanes back to (B, C_out, L); conv2's last-L window sits at
    # per-segment positions [0, L).
    return jnp.transpose(out.reshape(C_out, B, Lpad)[:, :, :L], (1, 0, 2))


def ref_forward(x, w1, b1, w2, b2, wds3, bds, K, D):
    """Pure-JAX reference matching the PyTorch forward (eval mode)."""
    P = (K - 1) * D
    dn = ('NCH', 'OIH', 'NCH')
    out = jax.lax.conv_general_dilated(x, w1, (1,), [(P, P)],
                                       rhs_dilation=(D,), dimension_numbers=dn)
    out = jax.nn.relu(out + b1[None, :, None])
    out = jax.lax.conv_general_dilated(out, w2, (1,), [(P, P)],
                                       rhs_dilation=(D,), dimension_numbers=dn)
    out = jax.nn.relu(out + b2[None, :, None])
    res = jax.lax.conv_general_dilated(x, wds3, (1,), [(0, 0)],
                                       dimension_numbers=dn) + bds[None, :, None]
    L = x.shape[2]
    return jax.nn.relu(out[:, :, -L:] + res)


if __name__ == "__main__":
    # TemporalBlock(in_channels=4, out_channels=8, kernel_size=3, stride=1,
    #               dilation=2, dropout=0.1) -- dropout inactive at inference.
    B, C_in, C_out, L = 2, 4, 8, 16
    K, D = 3, 2

    key = jax.random.PRNGKey(0)
    ks = jax.random.split(key, 7)
    # kaiming_normal_(nonlinearity='relu'): std = sqrt(2 / fan_in)
    std1 = (2.0 / (C_in * K)) ** 0.5
    std2 = (2.0 / (C_out * K)) ** 0.5
    stdd = (2.0 / (C_in * 1)) ** 0.5
    w1 = std1 * jax.random.normal(ks[0], (C_out, C_in, K), jnp.float32)
    b1 = 0.1 * jax.random.normal(ks[1], (C_out,), jnp.float32)
    w2 = std2 * jax.random.normal(ks[2], (C_out, C_out, K), jnp.float32)
    b2 = 0.1 * jax.random.normal(ks[3], (C_out,), jnp.float32)
    wds3 = stdd * jax.random.normal(ks[4], (C_out, C_in, 1), jnp.float32)
    bds = 0.1 * jax.random.normal(ks[5], (C_out,), jnp.float32)
    x = jax.random.normal(ks[6], (B, C_in, L), jnp.float32)

    out = temporal_block(x, w1, b1, w2, b2, wds3, bds,
                         kernel_size=K, dilation=D)
    out = jax.block_until_ready(out)

    ref = ref_forward(x, w1, b1, w2, b2, wds3, bds, K, D)
    assert out.shape == ref.shape == (B, C_out, L)
    err = float(jnp.max(jnp.abs(out - ref)))
    assert jnp.allclose(out, ref, rtol=1e-4, atol=1e-4), f"max abs err = {err}"
    print("KERNEL_OK")
</pallas_src>

<mosaic_0001>
module attributes {stable_mosaic.version = 11 : i64} {
  func.func @_temporal_block_kernel(%arg0: i32, %arg1: memref<4x52xf32, #tpu.memory_space<vmem>>, %arg2: memref<8x12xf32, #tpu.memory_space<vmem>>, %arg3: memref<8x24xf32, #tpu.memory_space<vmem>>, %arg4: memref<8x4xf32, #tpu.memory_space<vmem>>, %arg5: memref<8x3xf32, #tpu.memory_space<vmem>>, %arg6: memref<8x48xf32, #tpu.memory_space<vmem>>) attributes {dimension_semantics = [#tpu.dimension_semantics<arbitrary>], iteration_bounds = array<i64: 1>, scalar_prefetch = 0 : i64, scratch_operands = 0 : i64, tpu.core_type = #tpu.core_type<tc>, window_params = [{pipeline_mode = #tpu.pipeline_mode<synchronous>, transform_indices = @transform_0, window_bounds = array<i64: 4, 52>}, {pipeline_mode = #tpu.pipeline_mode<synchronous>, transform_indices = @transform_1, window_bounds = array<i64: 8, 12>}, {pipeline_mode = #tpu.pipeline_mode<synchronous>, transform_indices = @transform_2, window_bounds = array<i64: 8, 24>}, {pipeline_mode = #tpu.pipeline_mode<synchronous>, transform_indices = @transform_3, window_bounds = array<i64: 8, 4>}, {pipeline_mode = #tpu.pipeline_mode<synchronous>, transform_indices = @transform_4, window_bounds = array<i64: 8, 3>}, {pipeline_mode = #tpu.pipeline_mode<synchronous>, transform_indices = @transform_5, window_bounds = array<i64: 8, 48>}]} {
    %c0 = arith.constant 0 : index
    %c0_0 = arith.constant 0 : index
    %0 = vector.load %arg1[%c0, %c0_0] : memref<4x52xf32, #tpu.memory_space<vmem>>, vector<4x48xf32>
    %c0_1 = arith.constant 0 : index
    %c2 = arith.constant 2 : index
    %1 = vector.load %arg1[%c0_1, %c2] : memref<4x52xf32, #tpu.memory_space<vmem>>, vector<4x48xf32>
    %c0_2 = arith.constant 0 : index
    %c4 = arith.constant 4 : index
    %2 = vector.load %arg1[%c0_2, %c4] : memref<4x52xf32, #tpu.memory_space<vmem>>, vector<4x48xf32>
    %3 = tpu.concatenate %0, %1, %2 in 0 : vector<4x48xf32>, vector<4x48xf32>, vector<4x48xf32> -> vector<12x48xf32>
    %c0_3 = arith.constant 0 : index
    %c0_4 = arith.constant 0 : index
    %4 = vector.load %arg2[%c0_3, %c0_4] : memref<8x12xf32, #tpu.memory_space<vmem>>, vector<8x12xf32>
    %cst = arith.constant dense<0.000000e+00> : vector<8x48xf32>
    %5 = tpu.matmul %4, %3, %cst {dimension_numbers = #tpu.dot_dimension_numbers<[1], [0], [0], [1], [0, 0, 1, 1], [], []>} : vector<8x12xf32>, vector<12x48xf32>, vector<8x48xf32> -> vector<8x48xf32>
    %c0_5 = arith.constant 0 : index
    %c0_6 = arith.constant 0 : index
    %6 = vector.load %arg5[%c0_5, %c0_6] : memref<8x3xf32, #tpu.memory_space<vmem>>, vector<8x1xf32>
    %7 = vector.broadcast %6 : vector<8x1xf32> to vector<8x48xf32>
    %8 = arith.addf %5, %7 : vector<8x48xf32>
    %cst_7 = arith.constant 0.000000e+00 : f32
    %9 = vector.broadcast %cst_7 : f32 to vector<8x48xf32>
    %10 = arith.maximumf %8, %9 : vector<8x48xf32>
    %11 = tpu.iota {dimensions = array<i32: 1>} : vector<8x48xi32>
    %c24_i32 = arith.constant 24 : i32
    %c0_i32 = arith.constant 0 : i32
    %12 = arith.cmpi eq, %c24_i32, %c0_i32 : i32
    %c1_i32 = arith.constant 1 : i32
    %13 = arith.select %12, %c1_i32, %c24_i32 : i32
    %14 = vector.broadcast %13 : i32 to vector<8x48xi32>
    %15 = arith.remsi %11, %14 : vector<8x48xi32>
    %c0_i32_8 = arith.constant 0 : i32
    %16 = vector.broadcast %c0_i32_8 : i32 to vector<8x48xi32>
    %17 = arith.cmpi ne, %15, %16 : vector<8x48xi32>
    %c0_i32_9 = arith.constant 0 : i32
    %18 = vector.broadcast %c0_i32_9 : i32 to vector<8x48xi32>
    %19 = arith.cmpi slt, %15, %18 : vector<8x48xi32>
    %c0_i32_10 = arith.constant 0 : i32
    %20 = arith.cmpi slt, %13, %c0_i32_10 : i32
    %21 = vector.broadcast %20 : i1 to vector<8x48xi1>
    %22 = vector.broadcast %21 : vector<8x48xi1> to vector<8x48xi1>
    %23 = arith.xori %19, %22 : vector<8x48xi1>
    %24 = arith.andi %23, %17 : vector<8x48xi1>
    %25 = vector.broadcast %13 : i32 to vector<8x48xi32>
    %26 = arith.addi %15, %25 : vector<8x48xi32>
    %27 = arith.select %24, %26, %15 : vector<8x48xi1>, vector<8x48xi32>
    %c20_i32 = arith.constant 20 : i32
    %28 = vector.broadcast %c20_i32 : i32 to vector<8x48xi32>
    %29 = arith.cmpi slt, %27, %28 : vector<8x48xi32>
    %cst_11 = arith.constant 0.000000e+00 : f32
    %30 = vector.broadcast %cst_11 : f32 to vector<8x48xf32>
    %31 = arith.select %29, %10, %30 : vector<8x48xi1>, vector<8x48xf32>
    %cst_12 = arith.constant 0.000000e+00 : f32
    %32 = vector.broadcast %cst_12 : f32 to vector<8x8xf32>
    %33 = tpu.concatenate %31, %32 in 1 : vector<8x48xf32>, vector<8x8xf32> -> vector<8x56xf32>
    %34 = vector.extract_strided_slice %33 {offsets = [0, 4], sizes = [8, 48], strides = [1, 1]} : vector<8x56xf32> to vector<8x48xf32>
    %35 = vector.extract_strided_slice %33 {offsets = [0, 6], sizes = [8, 48], strides = [1, 1]} : vector<8x56xf32> to vector<8x48xf32>
    %36 = vector.extract_strided_slice %33 {offsets = [0, 8], sizes = [8, 48], strides = [1, 1]} : vector<8x56xf32> to vector<8x48xf32>
    %37 = tpu.concatenate %34, %35, %36 in 0 : vector<8x48xf32>, vector<8x48xf32>, vector<8x48xf32> -> vector<24x48xf32>
    %c0_13 = arith.constant 0 : index
    %c0_14 = arith.constant 0 : index
    %38 = vector.load %arg3[%c0_13, %c0_14] : memref<8x24xf32, #tpu.memory_space<vmem>>, vector<8x24xf32>
    %cst_15 = arith.constant dense<0.000000e+00> : vector<8x48xf32>
    %39 = tpu.matmul %38, %37, %cst_15 {dimension_numbers = #tpu.dot_dimension_numbers<[1], [0], [0], [1], [0, 0, 1, 1], [], []>} : vector<8x24xf32>, vector<24x48xf32>, vector<8x48xf32> -> vector<8x48xf32>
    %c0_16 = arith.constant 0 : index
    %c1 = arith.constant 1 : index
    %40 = vector.load %arg5[%c0_16, %c1] : memref<8x3xf32, #tpu.memory_space<vmem>>, vector<8x1xf32>
    %41 = vector.broadcast %40 : vector<8x1xf32> to vector<8x48xf32>
    %42 = arith.addf %39, %41 : vector<8x48xf32>
    %cst_17 = arith.constant 0.000000e+00 : f32
    %43 = vector.broadcast %cst_17 : f32 to vector<8x48xf32>
    %44 = arith.maximumf %42, %43 : vector<8x48xf32>
    %c0_18 = arith.constant 0 : index
    %c0_19 = arith.constant 0 : index
    %45 = vector.load %arg4[%c0_18, %c0_19] : memref<8x4xf32, #tpu.memory_space<vmem>>, vector<8x4xf32>
    %c0_20 = arith.constant 0 : index
    %c4_21 = arith.constant 4 : index
    %46 = vector.load %arg1[%c0_20, %c4_21] : memref<4x52xf32, #tpu.memory_space<vmem>>, vector<4x48xf32>
    %cst_22 = arith.constant dense<0.000000e+00> : vector<8x48xf32>
    %47 = tpu.matmul %45, %46, %cst_22 {dimension_numbers = #tpu.dot_dimension_numbers<[1], [0], [0], [1], [0, 0, 1, 1], [], []>} : vector<8x4xf32>, vector<4x48xf32>, vector<8x48xf32> -> vector<8x48xf32>
    %c0_23 = arith.constant 0 : index
    %c2_24 = arith.constant 2 : index
    %48 = vector.load %arg5[%c0_23, %c2_24] : memref<8x3xf32, #tpu.memory_space<vmem>>, vector<8x1xf32>
    %49 = vector.broadcast %48 : vector<8x1xf32> to vector<8x48xf32>
    %50 = arith.addf %47, %49 : vector<8x48xf32>
    %51 = arith.addf %44, %50 : vector<8x48xf32>
    %cst_25 = arith.constant 0.000000e+00 : f32
    %52 = vector.broadcast %cst_25 : f32 to vector<8x48xf32>
    %53 = arith.maximumf %51, %52 : vector<8x48xf32>
    %c0_26 = arith.constant 0 : index
    %c0_27 = arith.constant 0 : index
    %54 = vector.load %arg6[%c0_26, %c0_27] : memref<8x48xf32, #tpu.memory_space<vmem>>, vector<8x48xf32>
    tpu.vector_store %arg6[%c0_26, %c0_27], %53 {strides = array<i32>} : memref<8x48xf32, #tpu.memory_space<vmem>>, vector<8x48xf32>,
    return
  }
  func.func @transform_0(%arg0: i32) -> (i32, i32) {
    %c0_i32 = arith.constant 0 : i32
    %c0_i32_0 = arith.constant 0 : i32
    %c0_i32_1 = arith.constant 0 : i32
    return %c0_i32, %c0_i32_0 : i32, i32
  }
  func.func @transform_1(%arg0: i32) -> (i32, i32) {
    %c0_i32 = arith.constant 0 : i32
    %c0_i32_0 = arith.constant 0 : i32
    %c0_i32_1 = arith.constant 0 : i32
    return %c0_i32, %c0_i32_0 : i32, i32
  }
  func.func @transform_2(%arg0: i32) -> (i32, i32) {
    %c0_i32 = arith.constant 0 : i32
    %c0_i32_0 = arith.constant 0 : i32
    %c0_i32_1 = arith.constant 0 : i32
    return %c0_i32, %c0_i32_0 : i32, i32
  }
  func.func @transform_3(%arg0: i32) -> (i32, i32) {
    %c0_i32 = arith.constant 0 : i32
    %c0_i32_0 = arith.constant 0 : i32
    %c0_i32_1 = arith.constant 0 : i32
    return %c0_i32, %c0_i32_0 : i32, i32
  }
  func.func @transform_4(%arg0: i32) -> (i32, i32) {
    %c0_i32 = arith.constant 0 : i32
    %c0_i32_0 = arith.constant 0 : i32
    %c0_i32_1 = arith.constant 0 : i32
    return %c0_i32, %c0_i32_0 : i32, i32
  }
  func.func @transform_5(%arg0: i32) -> (i32, i32) {
    %c0_i32 = arith.constant 0 : i32
    %c0_i32_0 = arith.constant 0 : i32
    %c0_i32_1 = arith.constant 0 : i32
    return %c0_i32, %c0_i32_0 : i32, i32
  }
}

</mosaic_0001>

<llo_original>
// kernel: tpu_custom_call.1
$region0: #{tpu_custom_call.1}
  #allocation0 [shape = 'u32[]', space=smem, size = 0x4, offset = 0x4, fixed_abs, tag = 'smem constant byte address 0x4 - core index']
  #allocation1 [shape = 'u32[144,128]{1,0:T(1,128)}', space=vmem, size = 0x12000, scoped, tag = 'internal scratch']
  %s0 = inlined_call_operand.vmem [shape: f32[4,52], index: 0, kind: input, shape index: {}]
  %s1 = inlined_call_operand.vmem [shape: f32[8,12], index: 1, kind: input, shape index: {}]
  %s2 = inlined_call_operand.vmem [shape: f32[8,24], index: 2, kind: input, shape index: {}]
  %s3 = inlined_call_operand.vmem [shape: f32[8,4], index: 3, kind: input, shape index: {}]
  %s4 = inlined_call_operand.vmem [shape: f32[8,3], index: 4, kind: input, shape index: {}]
  %s5 = inlined_call_operand.hbm [shape: f32[8,48], index: 5, kind: output, shape index: {}]
  %s6 = sld [smem:[#allocation0]]
  $region30: #{tpu_custom_call.1} parent=0
    _
  %s8 = ssub.s32 1, %s6
  %s9 = scalar_select 0, %s8, %s6
  $region1: #{tpu_custom_call.1} parent=0
    #allocation2 [shape = 'u8[4096]{0}', space=vmem, size = 0x1000, scoped, tag = 'output window, operand 0, single buffered']
    #allocation3 [shape = 's32[1]{0}', space=sflag, size = 0x4, scoped, tag = 'scoped memory for tpu_custom_call.1']
    %10 = vsyncpa [#allocation3], 0
    // Predicated region
    $region2: #{tpu_custom_call.1} parent=1 // pred_check
      _
    $region3: #{tpu_custom_call.1} parent=1 // pred_check_branch
      %12 = sbr.rel (0) target = $region5
    $region4: #{tpu_custom_call.1} parent=1 // pred_region
      _
    $region5: #{tpu_custom_call.1} parent=1 // pred_fallthru
      _
    // Predicated region
    $region6: #{tpu_custom_call.1} parent=1 // pred_check
      _
    $region7: #{tpu_custom_call.1} parent=1 // pred_check_branch
      %14 = sbr.rel (0) target = $region9
    $region8: #{tpu_custom_call.1} parent=1 // pred_region
      _
    $region9: #{tpu_custom_call.1} parent=1 // pred_fallthru
      _
    // Predicated region
    $region10: #{tpu_custom_call.1} parent=1 // pred_check
      _
    $region11: #{tpu_custom_call.1} parent=1 // pred_check_branch
      %16 = sbr.rel (0) target = $region13
    $region12: #{tpu_custom_call.1} parent=1 // pred_region
      _
    $region13: #{tpu_custom_call.1} parent=1 // pred_fallthru
      _
    // Predicated region
    $region14: #{tpu_custom_call.1} parent=1 // pred_check
      _
    $region15: #{tpu_custom_call.1} parent=1 // pred_check_branch
      %18 = sbr.rel (0) target = $region17
    $region16: #{tpu_custom_call.1} parent=1 // pred_region
      _
    $region17: #{tpu_custom_call.1} parent=1 // pred_fallthru
      _
    // Predicated region
    $region18: #{tpu_custom_call.1} parent=1 // pred_check
      _
    $region19: #{tpu_custom_call.1} parent=1 // pred_check_branch
      %20 = sbr.rel (0) target = $region21
    $region20: #{tpu_custom_call.1} parent=1 // pred_region
      _
    $region21: #{tpu_custom_call.1} parent=1 // pred_fallthru
      _
    %v21 = vld [vmem:[%s0] sm:$0xf]
    %v23 = vrot.slane %v21, 4
    %24 = vrot.lane.b32.xlu0 %v23, 126
    %v25 = vpop.permute.xlu0 %24
    %27 = vrot.lane.b32.xlu0 %v21, 124
    %v28 = vpop.permute.xlu0 %27
    %vm29 = vcmask 1043456
    %v30 = vsel %vm29, %v21, %v25
    %v31 = vld [vmem:[%s1] sm:$0xff]
    %v32 = vld [vmem:[%s4] sm:$0xff]
    %34 = vset.pattern.permute.xlu0 0
    %35 = vperm.xlu0 %34, %v32
    %v36 = vpop.permute.xlu0 %35
    %vm38 = vcmask 97280
    %v40 = vsel %vm38, %v31, 0
    %v42 = vsel %vm29, %v28, 0
    %44 = vmatprep.subr.mxu0 0.0
    %45 = vmatpush1.msra.mxu0 %v30
    %46 = vmatprep.subr.mxu0 0.0
    %47 = vmatpush1.msra.mxu0 %v42
    %48 = vmatprep.subr.mxu0 0.0
    %49 = vmatpush1.msra.mxu0 0.0
    %50 = vmatprep.subr.mxu0 0.0
    %51 = vmatpush1.msra.mxu0 0.0
    %52 = vmatprep.subr.mxu0 0.0
    %53 = vmatpush1.msra.mxu0 0.0
    %54 = vmatprep.subr.mxu0 0.0
    %55 = vmatpush1.msra.mxu0 0.0
    %56 = vmatprep.subr.mxu0 0.0
    %57 = vmatpush1.msra.mxu0 0.0
    %58 = vmatprep.subr.mxu0 0.0
    %59 = vmatpush1.msra.mxu0 0.0
    %60 = vmatprep.subr.mxu0 0.0
    %61 = vmatpush1.msra.mxu0 0.0
    %62 = vmatprep.subr.mxu0 0.0
    %63 = vmatpush1.msra.mxu0 0.0
    %64 = vmatprep.subr.mxu0 0.0
    %65 = vmatpush1.msra.mxu0 0.0
    %66 = vmatprep.subr.mxu0 0.0
    %67 = vmatpush1.msra.mxu0 0.0
    %68 = vmatprep.subr.mxu0 0.0
    %69 = vmatpush1.msra.mxu0 0.0
    %70 = vmatprep.subr.mxu0 0.0
    %71 = vmatpush1.msra.mxu0 0.0
    %72 = vmatprep.subr.mxu0 0.0
    %73 = vmatpush1.msra.mxu0 0.0
    %74 = vmatprep.subr.mxu0 0.0
    %75 = vmatpush1.msra.mxu0 0.0
    %76 = vmatprep.subr.mxu0 0.0
    %77 = vmatpush1.msra.mxu0 0.0
    %78 = vmatprep.subr.mxu0 0.0
    %79 = vmatpush1.msra.mxu0 0.0
    %80 = vmatprep.subr.mxu0 0.0
    %81 = vmatpush1.msra.mxu0 0.0
    %82 = vmatprep.subr.mxu0 0.0
    %83 = vmatpush1.msra.mxu0 0.0
    %84 = vmatprep.subr.mxu0 0.0
    %85 = vmatpush1.msra.mxu0 0.0
    %86 = vmatprep.subr.mxu0 0.0
    %87 = vmatpush1.msra.mxu0 0.0
    %88 = vmatprep.subr.mxu0 0.0
    %89 = vmatpush1.msra.mxu0 0.0
    %90 = vmatprep.subr.mxu0 0.0
    %91 = vmatpush1.msra.mxu0 0.0
    %92 = vmatprep.subr.mxu0 0.0
    %93 = vmatpush1.msra.mxu0 0.0
    %94 = vmatprep.subr.mxu0 0.0
    %95 = vmatpush1.msra.mxu0 0.0
    %96 = vmatprep.subr.mxu0 0.0
    %97 = vmatpush1.msra.mxu0 0.0
    %98 = vmatprep.subr.mxu0 0.0
    %99 = vmatpush1.msra.mxu0 0.0
    %100 = vmatprep.subr.mxu0 0.0
    %101 = vmatpush1.msra.mxu0 0.0
    %102 = vmatprep.subr.mxu0 0.0
    %103 = vmatpush1.msra.mxu0 0.0
    %104 = vmatprep.subr.mxu0 0.0
    %105 = vmatpush1.msra.mxu0 0.0
    %106 = vmatprep.subr.mxu0 0.0
    %107 = vmatpush1.msra.mxu0 0.0
    %108 = vmatprep.mubr.f32.mxu0 0.0
    %109 = vmatmul.mubr.f32.gmra.mrb[0].mxu0 %v40
    %v110 = vpop.f32.mrb[0].mxu0
    %v111 = vadd.f32 %v36, %v110
    %v112 = vpop.f32.mrb[0].mxu0
    %113 = vdwg.mxu0
    %v114 = vmax.f32 %v111, 0.0
    %v115 = vlaneseq
    %v116 = vand.u32 %v115, 127
    %vm117 = vcmp.lt.s32.totalorder %v116, 0
    %v118 = vsub.s32 0, %v116
    %v119 = vsel %vm117, %v118, %v116
    %v120 = vmul.u32.u64.compose %v119, 2863311531
    %v121 = vextract.low.u32 %v120
    %v122 = vextract.high.u32 %v120
    %v123 = vshrl.u32 %v122, 4
    %v124 = vmul.u32 %v123, 24
    %v125 = vsub.s32 %v119, %v124
    %v126 = vsub.s32 0, %v125
    %v127 = vsel %vm117, %v126, %v125
    %vm128 = vcmp.ne.s32.totalorder %v127, 0
    %vm129 = vcmp.lt.s32.totalorder %v127, 0
    %vm130 = vmand %vm129, %vm128
    %v131 = vadd.s32 %v127, 24
    %v132 = vsel %vm130, %v131, %v127
    %vm133 = vcmp.lt.s32.totalorder %v132, 20
    %v134 = vsel %vm133, %v114, 0.0
    %vm135 = vcmask 392192
    %v136 = vsel %vm135, %v134, 0.0
    %138 = vrot.lane.b32.xlu0 %v136, 126
    %v139 = vpop.permute.xlu0 %138
    %140 = vrot.lane.b32.xlu0 %v136, 124
    %v141 = vpop.permute.xlu0 %140
    %v142 = vld [vmem:[%s2] sm:$0xff]
    %143 = vset.pattern.permute.xlu0 1
    %144 = vperm.xlu0 %143, %v32
    %v145 = vpop.permute.xlu0 %144
    %147 = vrot.lane.b32.xlu0 %v139, 124
    %v148 = vpop.permute.xlu0 %147
    %149 = vrot.lane.b32.xlu0 %v141, 124
    %v150 = vpop.permute.xlu0 %149
    %vm154 = vcmask 195584
    %v156 = vsel %vm154, %v142, 0
    %158 = vmatprep.subr.mxu0 0.0
    %159 = vmatpush1.msra.mxu0 %v141
    %160 = vmatprep.subr.mxu0 0.0
    %161 = vmatpush1.msra.mxu0 %v148
    %162 = vmatprep.subr.mxu0 0.0
    %163 = vmatpush1.msra.mxu0 %v150
    %164 = vmatprep.subr.mxu0 0.0
    %165 = vmatpush1.msra.mxu0 0.0
    %166 = vmatprep.subr.mxu0 0.0
    %167 = vmatpush1.msra.mxu0 0.0
    %168 = vmatprep.subr.mxu0 0.0
    %169 = vmatpush1.msra.mxu0 0.0
    %170 = vmatprep.subr.mxu0 0.0
    %171 = vmatpush1.msra.mxu0 0.0
    %172 = vmatprep.subr.mxu0 0.0
    %173 = vmatpush1.msra.mxu0 0.0
    %174 = vmatprep.subr.mxu0 0.0
    %175 = vmatpush1.msra.mxu0 0.0
    %176 = vmatprep.subr.mxu0 0.0
    %177 = vmatpush1.msra.mxu0 0.0
    %178 = vmatprep.subr.mxu0 0.0
    %179 = vmatpush1.msra.mxu0 0.0
    %180 = vmatprep.subr.mxu0 0.0
    %181 = vmatpush1.msra.mxu0 0.0
    %182 = vmatprep.subr.mxu0 0.0
    %183 = vmatpush1.msra.mxu0 0.0
    %184 = vmatprep.subr.mxu0 0.0
    %185 = vmatpush1.msra.mxu0 0.0
    %186 = vmatprep.subr.mxu0 0.0
    %187 = vmatpush1.msra.mxu0 0.0
    %188 = vmatprep.subr.mxu0 0.0
    %189 = vmatpush1.msra.mxu0 0.0
    %190 = vmatprep.subr.mxu0 0.0
    %191 = vmatpush1.msra.mxu0 0.0
    %192 = vmatprep.subr.mxu0 0.0
    %193 = vmatpush1.msra.mxu0 0.0
    %194 = vmatprep.subr.mxu0 0.0
    %195 = vmatpush1.msra.mxu0 0.0
    %196 = vmatprep.subr.mxu0 0.0
    %197 = vmatpush1.msra.mxu0 0.0
    %198 = vmatprep.subr.mxu0 0.0
    %199 = vmatpush1.msra.mxu0 0.0
    %200 = vmatprep.subr.mxu0 0.0
    %201 = vmatpush1.msra.mxu0 0.0
    %202 = vmatprep.subr.mxu0 0.0
    %203 = vmatpush1.msra.mxu0 0.0
    %204 = vmatprep.subr.mxu0 0.0
    %205 = vmatpush1.msra.mxu0 0.0
    %206 = vmatprep.subr.mxu0 0.0
    %207 = vmatpush1.msra.mxu0 0.0
    %208 = vmatprep.subr.mxu0 0.0
    %209 = vmatpush1.msra.mxu0 0.0
    %210 = vmatprep.subr.mxu0 0.0
    %211 = vmatpush1.msra.mxu0 0.0
    %212 = vmatprep.subr.mxu0 0.0
    %213 = vmatpush1.msra.mxu0 0.0
    %214 = vmatprep.subr.mxu0 0.0
    %215 = vmatpush1.msra.mxu0 0.0
    %216 = vmatprep.subr.mxu0 0.0
    %217 = vmatpush1.msra.mxu0 0.0
    %218 = vmatprep.subr.mxu0 0.0
    %219 = vmatpush1.msra.mxu0 0.0
    %220 = vmatprep.subr.mxu0 0.0
    %221 = vmatpush1.msra.mxu0 0.0
    %222 = vmatprep.mubr.f32.mxu0 0.0
    %223 = vmatmul.mubr.f32.gmra.mrb[0].mxu0 %v156
    %v224 = vpop.f32.mrb[0].mxu0
    %v225 = vadd.f32 %v145, %v224
    %v226 = vpop.f32.mrb[0].mxu0
    %227 = vdwg.mxu0
    %v228 = vmax.f32 %v225, 0.0
    %v229 = vld [vmem:[%s3] sm:$0xff]
    %230 = vset.pattern.permute.xlu0 2
    %231 = vperm.xlu0 %230, %v32
    %v232 = vpop.permute.xlu0 %231
    %vm234 = vcmask 31744
    %v236 = vsel %vm234, %v229, 0
    %238 = vmatprep.subr.mxu0 0.0
    %239 = vmatpush1.msra.mxu0 %v42
    %240 = vmatprep.subr.mxu0 0.0
    %241 = vmatpush1.msra.mxu0 0.0
    %242 = vmatprep.subr.mxu0 0.0
    %243 = vmatpush1.msra.mxu0 0.0
    %244 = vmatprep.subr.mxu0 0.0
    %245 = vmatpush1.msra.mxu0 0.0
    %246 = vmatprep.subr.mxu0 0.0
    %247 = vmatpush1.msra.mxu0 0.0
    %248 = vmatprep.subr.mxu0 0.0
    %249 = vmatpush1.msra.mxu0 0.0
    %250 = vmatprep.subr.mxu0 0.0
    %251 = vmatpush1.msra.mxu0 0.0
    %252 = vmatprep.subr.mxu0 0.0
    %253 = vmatpush1.msra.mxu0 0.0
    %254 = vmatprep.subr.mxu0 0.0
    %255 = vmatpush1.msra.mxu0 0.0
    %256 = vmatprep.subr.mxu0 0.0
    %257 = vmatpush1.msra.mxu0 0.0
    %258 = vmatprep.subr.mxu0 0.0
    %259 = vmatpush1.msra.mxu0 0.0
    %260 = vmatprep.subr.mxu0 0.0
    %261 = vmatpush1.msra.mxu0 0.0
    %262 = vmatprep.subr.mxu0 0.0
    %263 = vmatpush1.msra.mxu0 0.0
    %264 = vmatprep.subr.mxu0 0.0
    %265 = vmatpush1.msra.mxu0 0.0
    %266 = vmatprep.subr.mxu0 0.0
    %267 = vmatpush1.msra.mxu0 0.0
    %268 = vmatprep.subr.mxu0 0.0
    %269 = vmatpush1.msra.mxu0 0.0
    %270 = vmatprep.subr.mxu0 0.0
    %271 = vmatpush1.msra.mxu0 0.0
    %272 = vmatprep.subr.mxu0 0.0
    %273 = vmatpush1.msra.mxu0 0.0
    %274 = vmatprep.subr.mxu0 0.0
    %275 = vmatpush1.msra.mxu0 0.0
    %276 = vmatprep.subr.mxu0 0.0
    %277 = vmatpush1.msra.mxu0 0.0
    %278 = vmatprep.subr.mxu0 0.0
    %279 = vmatpush1.msra.mxu0 0.0
    %280 = vmatprep.subr.mxu0 0.0
    %281 = vmatpush1.msra.mxu0 0.0
    %282 = vmatprep.subr.mxu0 0.0
    %283 = vmatpush1.msra.mxu0 0.0
    %284 = vmatprep.subr.mxu0 0.0
    %285 = vmatpush1.msra.mxu0 0.0
    %286 = vmatprep.subr.mxu0 0.0
    %287 = vmatpush1.msra.mxu0 0.0
    %288 = vmatprep.subr.mxu0 0.0
    %289 = vmatpush1.msra.mxu0 0.0
    %290 = vmatprep.subr.mxu0 0.0
    %291 = vmatpush1.msra.mxu0 0.0
    %292 = vmatprep.subr.mxu0 0.0
    %293 = vmatpush1.msra.mxu0 0.0
    %294 = vmatprep.subr.mxu0 0.0
    %295 = vmatpush1.msra.mxu0 0.0
    %296 = vmatprep.subr.mxu0 0.0
    %297 = vmatpush1.msra.mxu0 0.0
    %298 = vmatprep.subr.mxu0 0.0
    %299 = vmatpush1.msra.mxu0 0.0
    %300 = vmatprep.subr.mxu0 0.0
    %301 = vmatpush1.msra.mxu0 0.0
    %302 = vmatprep.mubr.f32.mxu0 0.0
    %303 = vmatmul.mubr.f32.gmra.mrb[0].mxu0 %v236
    %v304 = vpop.f32.mrb[0].mxu0
    %v305 = vadd.f32 %v232, %v304
    %v306 = vpop.f32.mrb[0].mxu0
    %307 = vdwg.mxu0
    %v308 = vadd.f32 %v228, %v305
    %v309 = vmax.f32 %v308, 0.0
    %310 = vst.msk [vmem:[#allocation2] sm:$0xff] %vm135, %v309
    // Predicated region
    $region22: #{tpu_custom_call.1} parent=1 // pred_check
      _
    $region23: #{tpu_custom_call.1} parent=1 // pred_check_branch
      %312 = sbr.rel (0) target = $region25
    $region24: #{tpu_custom_call.1} parent=1 // pred_region
      %s314 = ssub.s32 128, 128
      %315 = vsyncadd [#allocation3], %s314
      %s317 = sshll.u32 [#allocation2], 4
      %s318 = int_to_ptr.vmem [resolvable:$true] %s317
      %320 = dma.vmem_to_hbm [thread:$0]  %s318, 128, %s5, [#allocation3]
    $region25: #{tpu_custom_call.1} parent=1 // pred_fallthru
      _
    // Predicated region
    $region26: #{tpu_custom_call.1} parent=1 // pred_check
      _
    $region27: #{tpu_custom_call.1} parent=1 // pred_check_branch
      %322 = sbr.rel (0) target = $region29
    $region28: #{tpu_custom_call.1} parent=1 // pred_region
      %323 = dma.done [#allocation3], 128
    $region29: #{tpu_custom_call.1} parent=1 // pred_fallthru
      _
    %324 = vsyncpa [#allocation3], 1

</llo_original>
